<compile_context>
chip_gen: v7x
topology: tpu7x:2x2x1
jax: 0.10.0
libtpu: 0.0.40
codegen_flags: <defaults>
</compile_context>

<pallas_src>
import jax
import jax.numpy as jnp
from jax.experimental import pallas as pl
from jax.experimental.pallas import tpu as pltpu

EPS = 1e-6  # Qwen2RMSNorm default eps


def _round_up(x, m):
    return ((x + m - 1) // m) * m


def lm_head_kernel(x_ref, gamma_ref, w_ref, o_ref, normed_ref):
    # x_ref:      (tm, H)  f32   flattened hidden-state tile
    # gamma_ref:  (1,  H)  f32   RMSNorm weight
    # w_ref:      (tv, H)  bf16  lm_head weight slab (PyTorch [V, H] layout)
    # o_ref:      (tm, tv) f32   logits tile
    # normed_ref: (tm, H)  bf16  VMEM scratch, persists across the vocab sweep
    @pl.when(pl.program_id(1) == 0)
    def _():
        x = x_ref[...]
        var = jnp.mean(x * x, axis=-1, keepdims=True)
        inv = jax.lax.rsqrt(var + EPS)
        normed_ref[...] = (x * inv * gamma_ref[...]).astype(normed_ref.dtype)

    # (tm, H) . (tv, H)^T -> (tm, tv), bf16 inputs, f32 accumulation on the MXU.
    o_ref[...] = jax.lax.dot_general(
        normed_ref[...], w_ref[...],
        dimension_numbers=(((1,), (1,)), ((), ())),
        preferred_element_type=jnp.float32,
    ).astype(o_ref.dtype)


def lm_head(hidden_states, norm_weight, lm_head_weight, *, tm=256, tv=512):
    """hidden_states: [B, S, H] f32
       norm_weight:   [H]       f32  (RMSNorm gamma)
       lm_head_weight:[V, H]    f32  (PyTorch Linear weight, no bias)
       returns logits [B, S, V] f32
    """
    B, S, H = hidden_states.shape
    V = lm_head_weight.shape[0]
    M = B * S

    # Shrink tiles for small problems, keep (8, 128) tiling legality.
    tm = min(tm, _round_up(M, 8))
    tv = min(tv, _round_up(V, 128))
    M_pad = _round_up(M, tm)
    V_pad = _round_up(V, tv)

    x2d = hidden_states.reshape(M, H).astype(jnp.float32)
    if M_pad != M:
        x2d = jnp.pad(x2d, ((0, M_pad - M), (0, 0)))
    gamma = norm_weight.reshape(1, H).astype(jnp.float32)

    # Stream the weight in its native [V, H] layout as bf16 (halves HBM bytes).
    w = lm_head_weight.astype(jnp.bfloat16)
    if V_pad != V:
        w = jnp.pad(w, ((0, V_pad - V), (0, 0)))

    grid = (M_pad // tm, V_pad // tv)
    out = pl.pallas_call(
        lm_head_kernel,
        out_shape=jax.ShapeDtypeStruct((M_pad, V_pad), jnp.float32),
        grid_spec=pltpu.PrefetchScalarGridSpec(
            num_scalar_prefetch=0,
            grid=grid,
            in_specs=[
                pl.BlockSpec((tm, H), lambda i, j: (i, 0)),   # x row tile
                pl.BlockSpec((1, H), lambda i, j: (0, 0)),    # gamma (replicated)
                pl.BlockSpec((tv, H), lambda i, j: (j, 0)),   # W slab [tv, H]
            ],
            out_specs=pl.BlockSpec((tm, tv), lambda i, j: (i, j)),
            scratch_shapes=[pltpu.VMEM((tm, H), jnp.bfloat16)],  # cached normed x
        ),
        compiler_params=pltpu.CompilerParams(
            dimension_semantics=("parallel", "arbitrary"),
            vmem_limit_bytes=48 * 1024 * 1024,
        ),
    )(x2d, gamma, w)

    out = out[:M, :V]
    return out.reshape(B, S, V)


def reference_f32(hidden_states, norm_weight, lm_head_weight):
    var = jnp.mean(hidden_states * hidden_states, axis=-1, keepdims=True)
    normed = hidden_states * jax.lax.rsqrt(var + EPS) * norm_weight
    return jnp.einsum("bsh,vh->bsv", normed, lm_head_weight)


def reference_bf16_matmul(hidden_states, norm_weight, lm_head_weight):
    # Matches the kernel numerics: f32 RMSNorm, bf16 matmul operands, f32 acc.
    var = jnp.mean(hidden_states * hidden_states, axis=-1, keepdims=True)
    normed = (hidden_states * jax.lax.rsqrt(var + EPS) * norm_weight)
    return jnp.einsum(
        "bsh,vh->bsv",
        normed.astype(jnp.bfloat16),
        lm_head_weight.astype(jnp.bfloat16),
        preferred_element_type=jnp.float32,
    )


if __name__ == "__main__":
    # Small shapes; S and V deliberately NOT tile multiples to exercise padding.
    B, S, H, V = 2, 7, 128, 320
    key = jax.random.PRNGKey(0)
    k1, k2, k3 = jax.random.split(key, 3)

    hidden_states = jax.random.normal(k1, (B, S, H), dtype=jnp.float32)
    norm_weight = 1.0 + 0.01 * jax.random.normal(k2, (H,), dtype=jnp.float32)
    lm_head_weight = 0.02 * jax.random.normal(k3, (V, H), dtype=jnp.float32)

    logits = lm_head(hidden_states, norm_weight, lm_head_weight)
    logits = jax.block_until_ready(logits)

    assert logits.shape == (B, S, V)
    ref_bf16 = reference_bf16_matmul(hidden_states, norm_weight, lm_head_weight)
    ref_f32 = reference_f32(hidden_states, norm_weight, lm_head_weight)
    assert jnp.allclose(logits, ref_bf16, atol=1e-2, rtol=1e-2), \
        "mismatch vs bf16-matmul reference"
    assert jnp.allclose(logits, ref_f32, atol=3e-2, rtol=3e-2), \
        "mismatch vs f32 reference"
    print("KERNEL_OK")
</pallas_src>

<mosaic_0001>
module attributes {stable_mosaic.version = 11 : i64} {
  func.func @lm_head_kernel(%arg0: i32, %arg1: i32, %arg2: memref<16x128xf32, #tpu.memory_space<vmem>>, %arg3: memref<1x128xf32, #tpu.memory_space<vmem>>, %arg4: memref<384x128xbf16, #tpu.memory_space<vmem>>, %arg5: memref<16x384xf32, #tpu.memory_space<vmem>>, %arg6: memref<16x128xbf16, #tpu.memory_space<vmem>>) attributes {dimension_semantics = [#tpu.dimension_semantics<parallel>, #tpu.dimension_semantics<arbitrary>], iteration_bounds = array<i64: 1, 1>, scalar_prefetch = 0 : i64, scratch_operands = 1 : i64, tpu.core_type = #tpu.core_type<tc>, window_params = [{transform_indices = @transform_0, window_bounds = array<i64: 16, 128>}, {pipeline_mode = #tpu.pipeline_mode<synchronous>, transform_indices = @transform_1, window_bounds = array<i64: 1, 128>}, {transform_indices = @transform_2, window_bounds = array<i64: 384, 128>}, {transform_indices = @transform_3, window_bounds = array<i64: 16, 384>}]} {
    %c0_i32 = arith.constant 0 : i32
    %0 = arith.cmpi eq, %arg1, %c0_i32 : i32
    %1 = arith.extui %0 : i1 to i32
    %c0_i32_0 = arith.constant 0 : i32
    %2 = arith.cmpi ne, %1, %c0_i32_0 : i32
    scf.if %2 {
      %c0_6 = arith.constant 0 : index
      %c0_7 = arith.constant 0 : index
      %7 = vector.load %arg2[%c0_6, %c0_7] : memref<16x128xf32, #tpu.memory_space<vmem>>, vector<16x128xf32>
      %8 = arith.mulf %7, %7 : vector<16x128xf32>
      %cst_8 = arith.constant dense<0.000000e+00> : vector<16xf32>
      %9 = vector.multi_reduction <add>, %8, %cst_8 [1] : vector<16x128xf32> to vector<16xf32>
      %10 = vector.shape_cast %9 : vector<16xf32> to vector<16x1xf32>
      %cst_9 = arith.constant 1.280000e+02 : f32
      %11 = vector.broadcast %cst_9 : f32 to vector<16x1xf32>
      %12 = arith.divf %10, %11 : vector<16x1xf32>
      %cst_10 = arith.constant 9.99999997E-7 : f32
      %13 = vector.broadcast %cst_10 : f32 to vector<16x1xf32>
      %14 = arith.addf %12, %13 : vector<16x1xf32>
      %15 = math.rsqrt %14 : vector<16x1xf32>
      %16 = vector.broadcast %15 : vector<16x1xf32> to vector<16x128xf32>
      %17 = arith.mulf %7, %16 : vector<16x128xf32>
      %c0_11 = arith.constant 0 : index
      %c0_12 = arith.constant 0 : index
      %18 = vector.load %arg3[%c0_11, %c0_12] : memref<1x128xf32, #tpu.memory_space<vmem>>, vector<1x128xf32>
      %19 = vector.broadcast %18 : vector<1x128xf32> to vector<16x128xf32>
      %20 = arith.mulf %17, %19 : vector<16x128xf32>
      %21 = arith.truncf %20 : vector<16x128xf32> to vector<16x128xbf16>
      %c0_13 = arith.constant 0 : index
      %c0_14 = arith.constant 0 : index
      %22 = vector.load %arg6[%c0_13, %c0_14] : memref<16x128xbf16, #tpu.memory_space<vmem>>, vector<16x128xbf16>
      tpu.vector_store %arg6[%c0_13, %c0_14], %21 {strides = array<i32>} : memref<16x128xbf16, #tpu.memory_space<vmem>>, vector<16x128xbf16>,
    } else {
    }
    %c0 = arith.constant 0 : index
    %c0_1 = arith.constant 0 : index
    %3 = vector.load %arg6[%c0, %c0_1] : memref<16x128xbf16, #tpu.memory_space<vmem>>, vector<16x128xbf16>
    %c0_2 = arith.constant 0 : index
    %c0_3 = arith.constant 0 : index
    %4 = vector.load %arg4[%c0_2, %c0_3] : memref<384x128xbf16, #tpu.memory_space<vmem>>, vector<384x128xbf16>
    %cst = arith.constant dense<0.000000e+00> : vector<16x384xf32>
    %5 = tpu.matmul %3, %4, %cst {dimension_numbers = #tpu.dot_dimension_numbers<[1], [1], [0], [0], [0, 0, 1, 0], [], []>} : vector<16x128xbf16>, vector<384x128xbf16>, vector<16x384xf32> -> vector<16x384xf32>
    %c0_4 = arith.constant 0 : index
    %c0_5 = arith.constant 0 : index
    %6 = vector.load %arg5[%c0_4, %c0_5] : memref<16x384xf32, #tpu.memory_space<vmem>>, vector<16x384xf32>
    tpu.vector_store %arg5[%c0_4, %c0_5], %5 {strides = array<i32>} : memref<16x384xf32, #tpu.memory_space<vmem>>, vector<16x384xf32>,
    return
  }
  func.func @transform_0(%arg0: i32, %arg1: i32) -> (i32, i32) {
    %c0_i32 = arith.constant 0 : i32
    %c0_i32_0 = arith.constant 0 : i32
    return %arg0, %c0_i32 : i32, i32
  }
  func.func @transform_1(%arg0: i32, %arg1: i32) -> (i32, i32) {
    %c0_i32 = arith.constant 0 : i32
    %c0_i32_0 = arith.constant 0 : i32
    %c0_i32_1 = arith.constant 0 : i32
    return %c0_i32, %c0_i32_0 : i32, i32
  }
  func.func @transform_2(%arg0: i32, %arg1: i32) -> (i32, i32) {
    %c0_i32 = arith.constant 0 : i32
    %c0_i32_0 = arith.constant 0 : i32
    return %arg1, %c0_i32 : i32, i32
  }
  func.func @transform_3(%arg0: i32, %arg1: i32) -> (i32, i32) {
    %c0_i32 = arith.constant 0 : i32
    return %arg0, %arg1 : i32, i32
  }
}

</mosaic_0001>

<llo_original>
// kernel: tpu_custom_call.1
$region0: #{tpu_custom_call.1}
  #allocation0 [shape = 'u32[]', space=smem, size = 0x4, offset = 0x4, fixed_abs, tag = 'smem constant byte address 0x4 - core index']
  #allocation1 [shape = 'u32[144,128]{1,0:T(1,128)}', space=vmem, size = 0x12000, scoped, tag = 'internal scratch']
  #allocation2 [shape = 'bf16[16,128]{1,0:T(16,128)(2,1)}', space=vmem, size = 0x1000, scoped, tag = 'scratch operand']
  %s0 = inlined_call_operand.hbm [shape: f32[16,128], index: 0, kind: input, shape index: {}]
  %s1 = inlined_call_operand.vmem [shape: f32[1,128], index: 1, kind: input, shape index: {}]
  %s2 = inlined_call_operand.hbm [shape: bf16[384,128], index: 2, kind: input, shape index: {}]
  %s3 = inlined_call_operand.hbm [shape: f32[16,384], index: 3, kind: output, shape index: {}]
  %s4 = sld [smem:[#allocation0]]
  $region34: #{tpu_custom_call.1} parent=0
    _
  %s6 = ssub.s32 1, %s4
  %s7 = scalar_select 0, %s6, %s4
  $region1: #{tpu_custom_call.1} parent=0
    #allocation3 [shape = 'u8[8192]{0}', space=vmem, size = 0x2000, scoped, tag = 'input window, operand 0, single buffered']
    #allocation4 [shape = 's32[1]{0}', space=sflag, size = 0x4, scoped, tag = 'scoped memory for tpu_custom_call.1']
    #allocation5 [shape = 's32[1]{0}', space=sflag, size = 0x4, scoped, tag = 'scoped memory for tpu_custom_call.1']
    #allocation6 [shape = 'u8[98304]{0}', space=vmem, size = 0x18000, scoped, tag = 'input window, operand 2, single buffered']
    #allocation7 [shape = 's32[1]{0}', space=sflag, size = 0x4, scoped, tag = 'scoped memory for tpu_custom_call.1']
    #allocation8 [shape = 'u8[24576]{0}', space=vmem, size = 0x6000, scoped, tag = 'output window, operand 0, single buffered']
    %8 = vsyncpa [#allocation4], 0
    %9 = vsyncpa [#allocation7], 0
    %10 = vsyncpa [#allocation5], 0
    // Predicated region
    $region2: #{tpu_custom_call.1} parent=1 // pred_check
      _
    $region3: #{tpu_custom_call.1} parent=1 // pred_check_branch
      %12 = sbr.rel (0) target = $region5
    $region4: #{tpu_custom_call.1} parent=1 // pred_region
      %s14 = ssub.s32 256, 256
      %15 = vsyncadd [#allocation4], %s14
      %s16 = sshll.u32 [#allocation3], 4
      %s17 = int_to_ptr.vmem [resolvable:$true] %s16
      %22 = dma.hbm_to_vmem [thread:$0]  %s0, 256, %s17, [#allocation4], 128, 128, 8
    $region5: #{tpu_custom_call.1} parent=1 // pred_fallthru
      _
    // Predicated region
    $region6: #{tpu_custom_call.1} parent=1 // pred_check
      _
    $region7: #{tpu_custom_call.1} parent=1 // pred_check_branch
      %24 = sbr.rel (0) target = $region9
    $region8: #{tpu_custom_call.1} parent=1 // pred_region
      _
    $region9: #{tpu_custom_call.1} parent=1 // pred_fallthru
      _
    // Predicated region
    $region10: #{tpu_custom_call.1} parent=1 // pred_check
      _
    $region11: #{tpu_custom_call.1} parent=1 // pred_check_branch
      %26 = sbr.rel (0) target = $region13
    $region12: #{tpu_custom_call.1} parent=1 // pred_region
      %s28 = ssub.s32 3072, 3072
      %29 = vsyncadd [#allocation7], %s28
      %s30 = sshll.u32 [#allocation6], 4
      %s31 = int_to_ptr.vmem [resolvable:$true] %s30
      %36 = dma.hbm_to_vmem [thread:$0]  %s2, 3072, %s31, [#allocation7], 64, 64, 4
    $region13: #{tpu_custom_call.1} parent=1 // pred_fallthru
      _
    // Predicated region
    $region14: #{tpu_custom_call.1} parent=1 // pred_check
      _
    $region15: #{tpu_custom_call.1} parent=1 // pred_check_branch
      %38 = sbr.rel (0) target = $region17
    $region16: #{tpu_custom_call.1} parent=1 // pred_region
      %39 = dma.done [#allocation4], 256
    $region17: #{tpu_custom_call.1} parent=1 // pred_fallthru
      _
    // Predicated region
    $region18: #{tpu_custom_call.1} parent=1 // pred_check
      _
    $region19: #{tpu_custom_call.1} parent=1 // pred_check_branch
      %41 = sbr.rel (0) target = $region21
    $region20: #{tpu_custom_call.1} parent=1 // pred_region
      %42 = dma.done [#allocation7], 3072
    $region21: #{tpu_custom_call.1} parent=1 // pred_fallthru
      _
    %p44 = scmp.eq.s32.totalorder 0, 0
    // Predicated region
    $region22: #{tpu_custom_call.1} parent=1 // pred_check
      %p45 = pneg %p44
    $region23: #{tpu_custom_call.1} parent=1 // pred_check_branch
      %47 = sbr.rel (%p45) target = $region25
    $region24: #{tpu_custom_call.1} parent=1 // pred_region
      %v48 = vld [vmem:[#allocation3] sm:$0xff]
      %v49 = vld [vmem:[#allocation3 + $0x8] sm:$0xff]
      %v50 = vmul.f32 %v48, %v48
      %v51 = vmul.f32 %v49, %v49
      %52 = vadd.xlane.f32.xlu0 %v50
      %v53 = vpop.xlane.xlu0 %52
      %54 = vadd.xlane.f32.xlu0 %v51
      %v55 = vpop.xlane.xlu0 %54
      %v56 = vrcp.pop 128.0
      %v57 = vmul.f32 %v53, %v56
      %v58 = vmul.f32 %v55, %v56
      %v59 = vadd.f32 %v57, 1e-06
      %v60 = vadd.f32 %v58, 1e-06
      %v61 = vrsqrt.pop %v59
      %v62 = vrsqrt.pop %v60
      %v63 = vmul.f32 %v48, %v61
      %v64 = vmul.f32 %v49, %v62
      %v65 = vld [vmem:[%s1] sm:$0x1]
      %v67 = vlaneseq
      %v68 = vshrl.u32 %v67, 7
      %v69 = vsub.s32 0, %v68
      %v70 = vrot.slane %v65, %v69
      %v72 = vmul.f32 %v63, %v70
      %v73 = vmul.f32 %v64, %v70
      %v74 = vpack.c.bf16 %v73, %v72
      %75 = vst [vmem:[#allocation2] sm:$0xff] %v74
    $region25: #{tpu_custom_call.1} parent=1 // pred_fallthru
      _
    %v76 = vld [vmem:[#allocation2] sm:$0xff]
    %v77 = vld [vmem:[#allocation6] sm:$0xf]
    %v78 = vld [vmem:[#allocation6 + $0x4] sm:$0xf]
    %v79 = vld [vmem:[#allocation6 + $0x8] sm:$0xf]
    %v80 = vld [vmem:[#allocation6 + $0xc] sm:$0xf]
    %v81 = vld [vmem:[#allocation6 + $0x10] sm:$0xf]
    %v82 = vld [vmem:[#allocation6 + $0x14] sm:$0xf]
    %v83 = vld [vmem:[#allocation6 + $0x18] sm:$0xf]
    %v84 = vld [vmem:[#allocation6 + $0x1c] sm:$0xf]
    %v85 = vld [vmem:[#allocation6 + $0x20] sm:$0xf]
    %v86 = vld [vmem:[#allocation6 + $0x24] sm:$0xf]
    %v87 = vld [vmem:[#allocation6 + $0x28] sm:$0xf]
    %v88 = vld [vmem:[#allocation6 + $0x2c] sm:$0xf]
    %v89 = vld [vmem:[#allocation6 + $0x30] sm:$0xf]
    %v90 = vld [vmem:[#allocation6 + $0x34] sm:$0xf]
    %v91 = vld [vmem:[#allocation6 + $0x38] sm:$0xf]
    %v92 = vld [vmem:[#allocation6 + $0x3c] sm:$0xf]
    %v93 = vld [vmem:[#allocation6 + $0x40] sm:$0xf]
    %v94 = vld [vmem:[#allocation6 + $0x44] sm:$0xf]
    %v95 = vld [vmem:[#allocation6 + $0x48] sm:$0xf]
    %v96 = vld [vmem:[#allocation6 + $0x4c] sm:$0xf]
    %v97 = vld [vmem:[#allocation6 + $0x50] sm:$0xf]
    %v98 = vld [vmem:[#allocation6 + $0x54] sm:$0xf]
    %v99 = vld [vmem:[#allocation6 + $0x58] sm:$0xf]
    %v100 = vld [vmem:[#allocation6 + $0x5c] sm:$0xf]
    %v101 = vld [vmem:[#allocation6 + $0x60] sm:$0xf]
    %v102 = vld [vmem:[#allocation6 + $0x64] sm:$0xf]
    %v103 = vld [vmem:[#allocation6 + $0x68] sm:$0xf]
    %v104 = vld [vmem:[#allocation6 + $0x6c] sm:$0xf]
    %v105 = vld [vmem:[#allocation6 + $0x70] sm:$0xf]
    %v106 = vld [vmem:[#allocation6 + $0x74] sm:$0xf]
    %v107 = vld [vmem:[#allocation6 + $0x78] sm:$0xf]
    %v108 = vld [vmem:[#allocation6 + $0x7c] sm:$0xf]
    %v109 = vld [vmem:[#allocation6 + $0x80] sm:$0xf]
    %v110 = vld [vmem:[#allocation6 + $0x84] sm:$0xf]
    %v111 = vld [vmem:[#allocation6 + $0x88] sm:$0xf]
    %v112 = vld [vmem:[#allocation6 + $0x8c] sm:$0xf]
    %v113 = vld [vmem:[#allocation6 + $0x90] sm:$0xf]
    %v114 = vld [vmem:[#allocation6 + $0x94] sm:$0xf]
    %v115 = vld [vmem:[#allocation6 + $0x98] sm:$0xf]
    %v116 = vld [vmem:[#allocation6 + $0x9c] sm:$0xf]
    %v117 = vld [vmem:[#allocation6 + $0xa0] sm:$0xf]
    %v118 = vld [vmem:[#allocation6 + $0xa4] sm:$0xf]
    %v119 = vld [vmem:[#allocation6 + $0xa8] sm:$0xf]
    %v120 = vld [vmem:[#allocation6 + $0xac] sm:$0xf]
    %v121 = vld [vmem:[#allocation6 + $0xb0] sm:$0xf]
    %v122 = vld [vmem:[#allocation6 + $0xb4] sm:$0xf]
    %v123 = vld [vmem:[#allocation6 + $0xb8] sm:$0xf]
    %v124 = vld [vmem:[#allocation6 + $0xbc] sm:$0xf]
    %v173 = vunpack.c.l.b16 %v77
    %v174 = vunpack.c.l.b16 %v78
    %v175 = vunpack.c.l.b16 %v79
    %v176 = vunpack.c.l.b16 %v80
    %v177 = vunpack.c.l.b16 %v81
    %v178 = vunpack.c.l.b16 %v82
    %v179 = vunpack.c.l.b16 %v83
    %v180 = vunpack.c.l.b16 %v84
    %v181 = vunpack.c.l.b16 %v85
    %v182 = vunpack.c.l.b16 %v86
    %v183 = vunpack.c.l.b16 %v87
    %v184 = vunpack.c.l.b16 %v88
    %v185 = vunpack.c.l.b16 %v89
    %v186 = vunpack.c.l.b16 %v90
    %v187 = vunpack.c.l.b16 %v91
    %v188 = vunpack.c.l.b16 %v92
    %v189 = vunpack.c.l.b16 %v93
    %v190 = vunpack.c.l.b16 %v94
    %v191 = vunpack.c.l.b16 %v95
    %v192 = vunpack.c.l.b16 %v96
    %v193 = vunpack.c.l.b16 %v97
    %v194 = vunpack.c.l.b16 %v98
    %v195 = vunpack.c.l.b16 %v99
    %v196 = vunpack.c.l.b16 %v100
    %v197 = vunpack.c.l.b16 %v101
    %v198 = vunpack.c.l.b16 %v102
    %v199 = vunpack.c.l.b16 %v103
    %v200 = vunpack.c.l.b16 %v104
    %v201 = vunpack.c.l.b16 %v105
    %v202 = vunpack.c.l.b16 %v106
    %v203 = vunpack.c.l.b16 %v107
    %v204 = vunpack.c.l.b16 %v108
    %v205 = vunpack.c.l.b16 %v109
    %v206 = vunpack.c.l.b16 %v110
    %v207 = vunpack.c.l.b16 %v111
    %v208 = vunpack.c.l.b16 %v112
    %v209 = vunpack.c.l.b16 %v113
    %v210 = vunpack.c.l.b16 %v114
    %v211 = vunpack.c.l.b16 %v115
    %v212 = vunpack.c.l.b16 %v116
    %v213 = vunpack.c.l.b16 %v117
    %v214 = vunpack.c.l.b16 %v118
    %v215 = vunpack.c.l.b16 %v119
    %v216 = vunpack.c.l.b16 %v120
    %v217 = vunpack.c.l.b16 %v121
    %v218 = vunpack.c.l.b16 %v122
    %v219 = vunpack.c.l.b16 %v123
    %v220 = vunpack.c.l.b16 %v124
    %v221 = vpack.c.b16 %v174, %v173
    %v222 = vpack.c.b16 %v176, %v175
    %v223 = vpack.c.b16 %v178, %v177
    %v224 = vpack.c.b16 %v180, %v179
    %v225 = vpack.c.b16 %v182, %v181
    %v226 = vpack.c.b16 %v184, %v183
    %v227 = vpack.c.b16 %v186, %v185
    %v228 = vpack.c.b16 %v188, %v187
    %v229 = vpack.c.b16 %v190, %v189
    %v230 = vpack.c.b16 %v192, %v191
    %v231 = vpack.c.b16 %v194, %v193
    %v232 = vpack.c.b16 %v196, %v195
    %v233 = vpack.c.b16 %v198, %v197
    %v234 = vpack.c.b16 %v200, %v199
    %v235 = vpack.c.b16 %v202, %v201
    %v236 = vpack.c.b16 %v204, %v203
    %v237 = vpack.c.b16 %v206, %v205
    %v238 = vpack.c.b16 %v208, %v207
    %v239 = vpack.c.b16 %v210, %v209
    %v240 = vpack.c.b16 %v212, %v211
    %v241 = vpack.c.b16 %v214, %v213
    %v242 = vpack.c.b16 %v216, %v215
    %v243 = vpack.c.b16 %v218, %v217
    %v244 = vpack.c.b16 %v220, %v219
    %269 = vmatprep.subr.bf16.mxu0 0
    %270 = vmatpush1.bf16.xpose.msra.mxu0 %v221
    %271 = vmatprep.subr.bf16.mxu0 0
    %272 = vmatpush1.bf16.xpose.msra.mxu0 %v222
    %273 = vmatprep.subr.bf16.mxu0 0
    %274 = vmatpush1.bf16.xpose.msra.mxu0 %v223
    %275 = vmatprep.subr.bf16.mxu0 0
    %276 = vmatpush1.bf16.xpose.msra.mxu0 %v224
    %277 = vmatprep.subr.bf16.mxu0 0
    %278 = vmatpush1.bf16.xpose.msra.mxu0 %v225
    %279 = vmatprep.subr.bf16.mxu0 0
    %280 = vmatpush1.bf16.xpose.msra.mxu0 %v226
    %281 = vmatprep.subr.bf16.mxu0 0
    %282 = vmatpush1.bf16.xpose.msra.mxu0 %v227
    %283 = vmatprep.subr.bf16.mxu0 0
    %284 = vmatpush1.bf16.xpose.msra.mxu0 %v228
    %285 = vmatprep.subr.bf16.mxu0 0
    %286 = vmatpush1.bf16.xpose.msra.mxu0 %v229
    %287 = vmatprep.subr.bf16.mxu0 0
    %288 = vmatpush1.bf16.xpose.msra.mxu0 %v230
    %289 = vmatprep.subr.bf16.mxu0 0
    %290 = vmatpush1.bf16.xpose.msra.mxu0 %v231
    %291 = vmatprep.subr.bf16.mxu0 0
    %292 = vmatpush1.bf16.xpose.msra.mxu0 %v232
    %293 = vmatprep.subr.bf16.mxu0 0
    %294 = vmatpush1.bf16.xpose.msra.mxu0 %v233
    %295 = vmatprep.subr.bf16.mxu0 0
    %296 = vmatpush1.bf16.xpose.msra.mxu0 %v234
    %297 = vmatprep.subr.bf16.mxu0 0
    %298 = vmatpush1.bf16.xpose.msra.mxu0 %v235
    %299 = vmatprep.subr.bf16.mxu0 0
    %300 = vmatpush1.bf16.xpose.msra.mxu0 %v236
    %301 = vmatprep.mubr.bf16.mxu0 0
    %302 = vmatmul.mubr.bf16.gmra.mrb[0].mxu0 %v76
    %v303 = vpop.f32.mrb[0].mxu0
    %v304 = vadd.f32 0.0, %v303
    %v305 = vpop.f32.mrb[0].mxu0
    %v306 = vadd.f32 0.0, %v305
    %v307 = vpop.f32.mrb[0].mxu0
    %v308 = vadd.f32 0.0, %v307
    %v309 = vpop.f32.mrb[0].mxu0
    %v310 = vadd.f32 0.0, %v309
    %311 = vdwg.mxu0
    %312 = vmatprep.subr.bf16.mxu0 0
    %313 = vmatpush1.bf16.xpose.msra.mxu0 %v237
    %314 = vmatprep.subr.bf16.mxu0 0
    %315 = vmatpush1.bf16.xpose.msra.mxu0 %v238
    %316 = vmatprep.subr.bf16.mxu0 0
    %317 = vmatpush1.bf16.xpose.msra.mxu0 %v239
    %318 = vmatprep.subr.bf16.mxu0 0
    %319 = vmatpush1.bf16.xpose.msra.mxu0 %v240
    %320 = vmatprep.subr.bf16.mxu0 0
    %321 = vmatpush1.bf16.xpose.msra.mxu0 %v241
    %322 = vmatprep.subr.bf16.mxu0 0
    %323 = vmatpush1.bf16.xpose.msra.mxu0 %v242
    %324 = vmatprep.subr.bf16.mxu0 0
    %325 = vmatpush1.bf16.xpose.msra.mxu0 %v243
    %326 = vmatprep.subr.bf16.mxu0 0
    %327 = vmatpush1.bf16.xpose.msra.mxu0 %v244
    %328 = vmatprep.subr.bf16.mxu0 0
    %329 = vmatpush1.bf16.xpose.msra.mxu0 0
    %330 = vmatprep.subr.bf16.mxu0 0
    %331 = vmatpush1.bf16.xpose.msra.mxu0 0
    %332 = vmatprep.subr.bf16.mxu0 0
    %333 = vmatpush1.bf16.xpose.msra.mxu0 0
    %334 = vmatprep.subr.bf16.mxu0 0
    %335 = vmatpush1.bf16.xpose.msra.mxu0 0
    %336 = vmatprep.subr.bf16.mxu0 0
    %337 = vmatpush1.bf16.xpose.msra.mxu0 0
    %338 = vmatprep.subr.bf16.mxu0 0
    %339 = vmatpush1.bf16.xpose.msra.mxu0 0
    %340 = vmatprep.subr.bf16.mxu0 0
    %341 = vmatpush1.bf16.xpose.msra.mxu0 0
    %342 = vmatprep.subr.bf16.mxu0 0
    %343 = vmatpush1.bf16.xpose.msra.mxu0 0
    %344 = vmatprep.mubr.bf16.mxu0 0
    %345 = vmatmul.mubr.bf16.gmra.mrb[0].mxu0 %v76
    %v346 = vpop.f32.mrb[0].mxu0
    %v347 = vadd.f32 0.0, %v346
    %v348 = vpop.f32.mrb[0].mxu0
    %v349 = vpop.f32.mrb[0].mxu0
    %v350 = vadd.f32 0.0, %v349
    %v351 = vpop.f32.mrb[0].mxu0
    %352 = vdwg.mxu0
    %353 = vst [vmem:[#allocation8] sm:$0xff] %v304
    %354 = vst [vmem:[#allocation8 + $0x8] sm:$0xff] %v306
    %355 = vst [vmem:[#allocation8 + $0x10] sm:$0xff] %v347
    %356 = vst [vmem:[#allocation8 + $0x18] sm:$0xff] %v308
    %357 = vst [vmem:[#allocation8 + $0x20] sm:$0xff] %v310
    %358 = vst [vmem:[#allocation8 + $0x28] sm:$0xff] %v350
    // Predicated region
    $region26: #{tpu_custom_call.1} parent=1 // pred_check
      _
    $region27: #{tpu_custom_call.1} parent=1 // pred_check_branch
      %360 = sbr.rel (0) target = $region29
    $region28: #{tpu_custom_call.1} parent=1 // pred_region
      %s362 = ssub.s32 768, 768
      %363 = vsyncadd [#allocation5], %s362
      %s364 = sshll.u32 [#allocation8], 4
      %s365 = int_to_ptr.vmem [resolvable:$true] %s364
      %370 = dma.vmem_to_hbm [thread:$0]  %s365, 768, %s3, [#allocation5], 384, 384, 24
    $region29: #{tpu_custom_call.1} parent=1 // pred_fallthru
      _
    // Predicated region
    $region30: #{tpu_custom_call.1} parent=1 // pred_check
      _
    $region31: #{tpu_custom_call.1} parent=1 // pred_check_branch
      %372 = sbr.rel (0) target = $region33
    $region32: #{tpu_custom_call.1} parent=1 // pred_region
      %373 = dma.done [#allocation5], 768
    $region33: #{tpu_custom_call.1} parent=1 // pred_fallthru
      _
    %374 = vsyncpa [#allocation4], 1
    %375 = vsyncpa [#allocation7], 1
    %376 = vsyncpa [#allocation5], 1

</llo_original>
